<compile_context>
chip_gen: v7x
topology: tpu7x:2x2x1
jax: 0.10.0
libtpu: 0.0.40
codegen_flags: <defaults>
</compile_context>

<pallas_src>
import functools
import math

import jax
import jax.numpy as jnp
from jax.experimental import pallas as pl
from jax.experimental.pallas import tpu as pltpu


# ---------------------------------------------------------------------------
# Problem / module hyper-parameters (synthetic, consistent with the module).
#   event_shape = (X_DIM,)  -> x_dim = X_DIM
#   param_shape = (P_DIM,)  -> p_dim = P_DIM
#   posterior = 'dense', posterior_layers = 2  ->  hidden layers [32, 32]
# ---------------------------------------------------------------------------
BATCH  = 256          # small demo batch; 2 lane-dense tiles of 128 -> grid=(2,)
X_DIM  = 16
P_DIM  = 4
HIDDEN = 32


def _softplus(x):
    # torch.nn.functional.softplus: log(1 + exp(x)), linear above threshold 20
    safe = jnp.minimum(x, 20.0)
    return jnp.where(x > 20.0, x, jnp.log1p(jnp.exp(safe)))


def _round_up(x, m):
    return (x + m - 1) // m * m


def vae_dense_kernel(xt_ref, w1t_ref, b1_ref, w2t_ref, b2_ref, w3t_ref, b3_ref,
                     epst_ref, thetat_ref, *, p_dim):
    """Fused DenseNN posterior + softplus + reparameterized sample.

    Transposed layout: batch on the lane axis.
      xt_ref    : (x_dim, TB)
      w1t_ref   : (H, x_dim)      b1_ref : (H, 1)
      w2t_ref   : (H, H)          b2_ref : (H, 1)
      w3t_ref   : (2*p_dim, H)    b3_ref : (2*p_dim, 1)   (merged mu/sigma head)
      epst_ref  : (p_dim, TB)
      thetat_ref: (p_dim, TB)
    """
    x = xt_ref[...]                                                      # (x_dim, TB)

    h1 = jnp.dot(w1t_ref[...], x, preferred_element_type=jnp.float32) + b1_ref[...]
    h1 = jnp.maximum(h1, 0.0)                                            # (H, TB)

    h2 = jnp.dot(w2t_ref[...], h1, preferred_element_type=jnp.float32) + b2_ref[...]
    h2 = jnp.maximum(h2, 0.0)                                            # (H, TB)

    # Single merged head matmul, then split mu / sigma along sublanes (in-register).
    head = jnp.dot(w3t_ref[...], h2, preferred_element_type=jnp.float32) + b3_ref[...]
    theta_mu    = head[:p_dim, :]                                        # (p_dim, TB)
    theta_sigma = _softplus(head[p_dim:, :])                             # (p_dim, TB)

    # Normal(mu, sigma).rsample() with externally supplied standard-normal eps.
    thetat_ref[...] = theta_mu + theta_sigma * epst_ref[...]


def _choose_tile_b(batch, x_dim, p_dim, hidden, vmem_budget_bytes=24 << 20):
    """Pick a lane-dense batch tile: sized from VMEM, multiple of 128, >=2 grid steps."""
    # rough f32 bytes per batch column resident in VMEM:
    #   double-buffered data/eps/out tiles + h1/h2/head live values
    bytes_per_col = 4 * (2 * (x_dim + 4 * p_dim) + 2 * hidden)
    tile = max(128, (vmem_budget_bytes // bytes_per_col) // 128 * 128)
    if batch > 128:
        # keep at least 2 parallel grid steps (v7x has 2 TensorCores)
        tile = min(tile, _round_up((batch + 1) // 2, 128))
    return int(tile)


def vae_flow_forward(data, params, eps, *, tile_b=None):
    """data (B, x_dim), eps (B, p_dim)  ->  theta_x (B, p_dim)."""
    B, x_dim = data.shape
    hidden = params["w1t"].shape[0]
    p_dim = params["b3"].shape[0] // 2

    if tile_b is None:
        tile_b = _choose_tile_b(B, x_dim, p_dim, hidden)
    padded_b = _round_up(B, tile_b)

    # Batch -> lane axis (layout plumbing outside the kernel); zero-pad the batch.
    data_t = jnp.pad(data.T, ((0, 0), (0, padded_b - B)))
    eps_t  = jnp.pad(eps.T,  ((0, 0), (0, padded_b - B)))

    grid = (padded_b // tile_b,)

    full    = lambda shape: pl.BlockSpec(shape, lambda i: (0, 0))
    batched = lambda rows:  pl.BlockSpec((rows, tile_b), lambda i: (0, i))

    kernel = functools.partial(vae_dense_kernel, p_dim=p_dim)

    theta_t = pl.pallas_call(
        kernel,
        out_shape=jax.ShapeDtypeStruct((p_dim, padded_b), jnp.float32),
        grid_spec=pltpu.PrefetchScalarGridSpec(
            num_scalar_prefetch=0,
            grid=grid,
            in_specs=[
                batched(x_dim),              # data^T
                full((hidden, x_dim)),       # W1^T
                full((hidden, 1)),           # b1
                full((hidden, hidden)),      # W2^T
                full((hidden, 1)),           # b2
                full((2 * p_dim, hidden)),   # W3^T (merged mu/sigma head)
                full((2 * p_dim, 1)),        # b3
                batched(p_dim),              # eps^T
            ],
            out_specs=batched(p_dim),        # theta^T (lane-dense store)
        ),
        compiler_params=pltpu.CompilerParams(
            dimension_semantics=("parallel",),
            vmem_limit_bytes=48 << 20),
    )(data_t, params["w1t"], params["b1"], params["w2t"], params["b2"],
      params["w3t"], params["b3"], eps_t)

    return theta_t[:, :B].T                  # (B, p_dim)


# ---------------------------------------------------------------------------
# Deterministic parameter initialization (PyTorch nn.Linear-style uniform).
# pyro.nn.DenseNN(x_dim, [32, 32], param_dims=[p_dim, p_dim]) is:
#   Linear(x_dim,32) -> ReLU -> Linear(32,32) -> ReLU -> Linear(32, 2*p_dim)
# Weights are stored pre-transposed (out_features, in_features), biases as
# (out_features, 1), matching the kernel's batch-on-lanes layout.
# ---------------------------------------------------------------------------
def init_params(key, x_dim, hidden, p_dim):
    def linear_t(k, fan_in, fan_out):
        kw, kb = jax.random.split(k)
        bound = 1.0 / math.sqrt(fan_in)
        w_t = jax.random.uniform(kw, (fan_out, fan_in), jnp.float32, -bound, bound)
        b = jax.random.uniform(kb, (fan_out, 1), jnp.float32, -bound, bound)
        return w_t, b

    k1, k2, k3 = jax.random.split(key, 3)
    w1t, b1 = linear_t(k1, x_dim, hidden)
    w2t, b2 = linear_t(k2, hidden, hidden)
    w3t, b3 = linear_t(k3, hidden, 2 * p_dim)   # merged [mu, sigma] head
    return {"w1t": w1t, "b1": b1, "w2t": w2t, "b2": b2, "w3t": w3t, "b3": b3}


def reference_forward(data, params, eps):
    p_dim = params["b3"].shape[0] // 2
    h1 = jnp.maximum(data @ params["w1t"].T + params["b1"].T, 0.0)
    h2 = jnp.maximum(h1 @ params["w2t"].T + params["b2"].T, 0.0)
    head = h2 @ params["w3t"].T + params["b3"].T
    mu, sraw = head[:, :p_dim], head[:, p_dim:]
    return mu + jax.nn.softplus(sraw) * eps


if __name__ == "__main__":
    key = jax.random.PRNGKey(0)
    k_param, k_data, k_eps = jax.random.split(key, 3)

    params = init_params(k_param, X_DIM, HIDDEN, P_DIM)
    data = jax.random.normal(k_data, (BATCH, X_DIM), jnp.float32)
    eps = jax.random.normal(k_eps, (BATCH, P_DIM), jnp.float32)

    theta_x = vae_flow_forward(data, params, eps)   # auto tile_b -> 128, grid=(2,)
    theta_x = jax.block_until_ready(theta_x)

    ref = reference_forward(data, params, eps)
    assert theta_x.shape == (BATCH, P_DIM)
    assert jnp.allclose(theta_x, ref, atol=1e-4, rtol=1e-4), \
        float(jnp.max(jnp.abs(theta_x - ref)))

    print("KERNEL_OK")
</pallas_src>

<mosaic_0001>
module attributes {stable_mosaic.version = 11 : i64} {
  func.func @vae_dense_kernel(%arg0: i32, %arg1: memref<16x128xf32, #tpu.memory_space<vmem>>, %arg2: memref<32x16xf32, #tpu.memory_space<vmem>>, %arg3: memref<32x1xf32, #tpu.memory_space<vmem>>, %arg4: memref<32x32xf32, #tpu.memory_space<vmem>>, %arg5: memref<32x1xf32, #tpu.memory_space<vmem>>, %arg6: memref<8x32xf32, #tpu.memory_space<vmem>>, %arg7: memref<8x1xf32, #tpu.memory_space<vmem>>, %arg8: memref<4x128xf32, #tpu.memory_space<vmem>>, %arg9: memref<4x128xf32, #tpu.memory_space<vmem>>) attributes {dimension_semantics = [#tpu.dimension_semantics<parallel>], iteration_bounds = array<i64: 2>, scalar_prefetch = 0 : i64, scratch_operands = 0 : i64, tpu.core_type = #tpu.core_type<tc>, window_params = [{transform_indices = @transform_0, window_bounds = array<i64: 16, 128>}, {pipeline_mode = #tpu.pipeline_mode<synchronous>, transform_indices = @transform_1, window_bounds = array<i64: 32, 16>}, {pipeline_mode = #tpu.pipeline_mode<synchronous>, transform_indices = @transform_2, window_bounds = array<i64: 32, 1>}, {pipeline_mode = #tpu.pipeline_mode<synchronous>, transform_indices = @transform_3, window_bounds = array<i64: 32, 32>}, {pipeline_mode = #tpu.pipeline_mode<synchronous>, transform_indices = @transform_4, window_bounds = array<i64: 32, 1>}, {pipeline_mode = #tpu.pipeline_mode<synchronous>, transform_indices = @transform_5, window_bounds = array<i64: 8, 32>}, {pipeline_mode = #tpu.pipeline_mode<synchronous>, transform_indices = @transform_6, window_bounds = array<i64: 8, 1>}, {transform_indices = @transform_7, window_bounds = array<i64: 4, 128>}, {transform_indices = @transform_8, window_bounds = array<i64: 4, 128>}]} {
    %c0 = arith.constant 0 : index
    %c0_0 = arith.constant 0 : index
    %0 = vector.load %arg1[%c0, %c0_0] : memref<16x128xf32, #tpu.memory_space<vmem>>, vector<16x128xf32>
    %c0_1 = arith.constant 0 : index
    %c0_2 = arith.constant 0 : index
    %1 = vector.load %arg2[%c0_1, %c0_2] : memref<32x16xf32, #tpu.memory_space<vmem>>, vector<32x16xf32>
    %cst = arith.constant dense<0.000000e+00> : vector<32x128xf32>
    %2 = tpu.matmul %1, %0, %cst {dimension_numbers = #tpu.dot_dimension_numbers<[1], [0], [0], [1], [0, 0, 1, 1], [], []>} : vector<32x16xf32>, vector<16x128xf32>, vector<32x128xf32> -> vector<32x128xf32>
    %c0_3 = arith.constant 0 : index
    %c0_4 = arith.constant 0 : index
    %3 = vector.load %arg3[%c0_3, %c0_4] : memref<32x1xf32, #tpu.memory_space<vmem>>, vector<32x1xf32>
    %4 = vector.broadcast %3 : vector<32x1xf32> to vector<32x128xf32>
    %5 = arith.addf %2, %4 : vector<32x128xf32>
    %cst_5 = arith.constant 0.000000e+00 : f32
    %6 = vector.broadcast %cst_5 : f32 to vector<32x128xf32>
    %7 = arith.maximumf %5, %6 : vector<32x128xf32>
    %c0_6 = arith.constant 0 : index
    %c0_7 = arith.constant 0 : index
    %8 = vector.load %arg4[%c0_6, %c0_7] : memref<32x32xf32, #tpu.memory_space<vmem>>, vector<32x32xf32>
    %cst_8 = arith.constant dense<0.000000e+00> : vector<32x128xf32>
    %9 = tpu.matmul %8, %7, %cst_8 {dimension_numbers = #tpu.dot_dimension_numbers<[1], [0], [0], [1], [0, 0, 1, 1], [], []>} : vector<32x32xf32>, vector<32x128xf32>, vector<32x128xf32> -> vector<32x128xf32>
    %c0_9 = arith.constant 0 : index
    %c0_10 = arith.constant 0 : index
    %10 = vector.load %arg5[%c0_9, %c0_10] : memref<32x1xf32, #tpu.memory_space<vmem>>, vector<32x1xf32>
    %11 = vector.broadcast %10 : vector<32x1xf32> to vector<32x128xf32>
    %12 = arith.addf %9, %11 : vector<32x128xf32>
    %cst_11 = arith.constant 0.000000e+00 : f32
    %13 = vector.broadcast %cst_11 : f32 to vector<32x128xf32>
    %14 = arith.maximumf %12, %13 : vector<32x128xf32>
    %c0_12 = arith.constant 0 : index
    %c0_13 = arith.constant 0 : index
    %15 = vector.load %arg6[%c0_12, %c0_13] : memref<8x32xf32, #tpu.memory_space<vmem>>, vector<8x32xf32>
    %cst_14 = arith.constant dense<0.000000e+00> : vector<8x128xf32>
    %16 = tpu.matmul %15, %14, %cst_14 {dimension_numbers = #tpu.dot_dimension_numbers<[1], [0], [0], [1], [0, 0, 1, 1], [], []>} : vector<8x32xf32>, vector<32x128xf32>, vector<8x128xf32> -> vector<8x128xf32>
    %c0_15 = arith.constant 0 : index
    %c0_16 = arith.constant 0 : index
    %17 = vector.load %arg7[%c0_15, %c0_16] : memref<8x1xf32, #tpu.memory_space<vmem>>, vector<8x1xf32>
    %18 = vector.broadcast %17 : vector<8x1xf32> to vector<8x128xf32>
    %19 = arith.addf %16, %18 : vector<8x128xf32>
    %20 = vector.extract_strided_slice %19 {offsets = [0, 0], sizes = [4, 128], strides = [1, 1]} : vector<8x128xf32> to vector<4x128xf32>
    %21 = vector.extract_strided_slice %19 {offsets = [4, 0], sizes = [4, 128], strides = [1, 1]} : vector<8x128xf32> to vector<4x128xf32>
    %cst_17 = arith.constant 2.000000e+01 : f32
    %22 = vector.broadcast %cst_17 : f32 to vector<4x128xf32>
    %23 = arith.minimumf %21, %22 : vector<4x128xf32>
    %cst_18 = arith.constant 2.000000e+01 : f32
    %24 = vector.broadcast %cst_18 : f32 to vector<4x128xf32>
    %25 = arith.cmpf ogt, %21, %24 : vector<4x128xf32>
    %26 = math.exp %23 : vector<4x128xf32>
    %27 = math.log1p %26 : vector<4x128xf32>
    %28 = arith.select %25, %21, %27 : vector<4x128xi1>, vector<4x128xf32>
    %c0_19 = arith.constant 0 : index
    %c0_20 = arith.constant 0 : index
    %29 = vector.load %arg8[%c0_19, %c0_20] : memref<4x128xf32, #tpu.memory_space<vmem>>, vector<4x128xf32>
    %30 = arith.mulf %28, %29 : vector<4x128xf32>
    %31 = arith.addf %20, %30 : vector<4x128xf32>
    %c0_21 = arith.constant 0 : index
    %c0_22 = arith.constant 0 : index
    %32 = vector.load %arg9[%c0_21, %c0_22] : memref<4x128xf32, #tpu.memory_space<vmem>>, vector<4x128xf32>
    tpu.vector_store %arg9[%c0_21, %c0_22], %31 {strides = array<i32>} : memref<4x128xf32, #tpu.memory_space<vmem>>, vector<4x128xf32>,
    return
  }
  func.func @transform_0(%arg0: i32) -> (i32, i32) {
    %c0_i32 = arith.constant 0 : i32
    %c0_i32_0 = arith.constant 0 : i32
    return %c0_i32, %arg0 : i32, i32
  }
  func.func @transform_1(%arg0: i32) -> (i32, i32) {
    %c0_i32 = arith.constant 0 : i32
    %c0_i32_0 = arith.constant 0 : i32
    %c0_i32_1 = arith.constant 0 : i32
    return %c0_i32, %c0_i32_0 : i32, i32
  }
  func.func @transform_2(%arg0: i32) -> (i32, i32) {
    %c0_i32 = arith.constant 0 : i32
    %c0_i32_0 = arith.constant 0 : i32
    %c0_i32_1 = arith.constant 0 : i32
    return %c0_i32, %c0_i32_0 : i32, i32
  }
  func.func @transform_3(%arg0: i32) -> (i32, i32) {
    %c0_i32 = arith.constant 0 : i32
    %c0_i32_0 = arith.constant 0 : i32
    %c0_i32_1 = arith.constant 0 : i32
    return %c0_i32, %c0_i32_0 : i32, i32
  }
  func.func @transform_4(%arg0: i32) -> (i32, i32) {
    %c0_i32 = arith.constant 0 : i32
    %c0_i32_0 = arith.constant 0 : i32
    %c0_i32_1 = arith.constant 0 : i32
    return %c0_i32, %c0_i32_0 : i32, i32
  }
  func.func @transform_5(%arg0: i32) -> (i32, i32) {
    %c0_i32 = arith.constant 0 : i32
    %c0_i32_0 = arith.constant 0 : i32
    %c0_i32_1 = arith.constant 0 : i32
    return %c0_i32, %c0_i32_0 : i32, i32
  }
  func.func @transform_6(%arg0: i32) -> (i32, i32) {
    %c0_i32 = arith.constant 0 : i32
    %c0_i32_0 = arith.constant 0 : i32
    %c0_i32_1 = arith.constant 0 : i32
    return %c0_i32, %c0_i32_0 : i32, i32
  }
  func.func @transform_7(%arg0: i32) -> (i32, i32) {
    %c0_i32 = arith.constant 0 : i32
    %c0_i32_0 = arith.constant 0 : i32
    return %c0_i32, %arg0 : i32, i32
  }
  func.func @transform_8(%arg0: i32) -> (i32, i32) {
    %c0_i32 = arith.constant 0 : i32
    %c0_i32_0 = arith.constant 0 : i32
    return %c0_i32, %arg0 : i32, i32
  }
}

</mosaic_0001>

<llo_original>
// kernel: tpu_custom_call.1
$region0: #{tpu_custom_call.1}
  #allocation0 [shape = 'u32[]', space=smem, size = 0x4, offset = 0x4, fixed_abs, tag = 'smem constant byte address 0x4 - core index']
  #allocation1 [shape = 'u32[144,128]{1,0:T(1,128)}', space=vmem, size = 0x12000, scoped, tag = 'internal scratch']
  %s0 = inlined_call_operand.vmem [shape: f32[16,256], index: 0, kind: input, shape index: {}]
  %s1 = inlined_call_operand.vmem [shape: f32[32,16], index: 1, kind: input, shape index: {}]
  %s2 = inlined_call_operand.vmem [shape: f32[32,1], index: 2, kind: input, shape index: {}]
  %s3 = inlined_call_operand.vmem [shape: f32[32,32], index: 3, kind: input, shape index: {}]
  %s4 = inlined_call_operand.vmem [shape: f32[32,1], index: 4, kind: input, shape index: {}]
  %s5 = inlined_call_operand.vmem [shape: f32[8,32], index: 5, kind: input, shape index: {}]
  %s6 = inlined_call_operand.vmem [shape: f32[8,1], index: 6, kind: input, shape index: {}]
  %s7 = inlined_call_operand.vmem [shape: f32[4,256], index: 7, kind: input, shape index: {}]
  %s8 = inlined_call_operand.hbm [shape: f32[4,256], index: 8, kind: output, shape index: {}]
  %s9 = sld [smem:[#allocation0]]
  $region103: #{tpu_custom_call.1} parent=0
    _
  %s11 = ssub.s32 1, %s9
  %s12 = scalar_select 0, %s11, %s9
  $region1: #{tpu_custom_call.1} parent=0
    #allocation2 [shape = 'u8[16384]{0}', space=vmem, size = 0x4000, scoped, tag = 'input window, operand 0']
    #allocation3 [shape = 'u8[4096]{0}', space=vmem, size = 0x1000, scoped, tag = 'output window, operand 0']
    #allocation4 [shape = 's32[2]{0}', space=sflag, size = 0x8, scoped, tag = 'scoped memory for tpu_custom_call.1']
    %13 = vsyncpa [#allocation4], 0
    %s14 = scalar_lea.sflag [#allocation4], 1
    %15 = vsyncpa %s14, 0
    loop: start=0, step=1, limit=4
    $region2: #{tpu_custom_call.1} parent=1 // loop_pre_header
      _
    $region3: #{tpu_custom_call.1} parent=1 // loop_header
      %s17 = sphi 0, %s21
      %p18 = scmp.ge.s32.totalorder %s17, 4
      %s27 = sphi 0, %s29
      %s30 = sphi 0, %s27
      %s31 = sphi 0, %s30
      %s47 = sphi 0, %s31
      %s51 = sphi 0, %s51
      %s53 = sphi 0, %s51
      %s54 = sphi 0, %s53
      %s68 = sphi 0, %s54
      %s72 = sphi 0, %s72
      %s74 = sphi 0, %s72
      %s75 = sphi 0, %s74
      %s89 = sphi 0, %s75
      %s93 = sphi 0, %s93
      %s95 = sphi 0, %s93
      %s96 = sphi 0, %s95
      %s110 = sphi 0, %s96
      %s114 = sphi 0, %s114
      %s116 = sphi 0, %s114
      %s117 = sphi 0, %s116
      %s131 = sphi 0, %s117
      %s135 = sphi 0, %s135
      %s137 = sphi 0, %s135
      %s138 = sphi 0, %s137
      %s152 = sphi 0, %s138
      %s156 = sphi 0, %s156
      %s158 = sphi 0, %s156
      %s159 = sphi 0, %s158
      %s173 = sphi 0, %s159
      %s179 = sphi 0, %s181
      %s182 = sphi 0, %s179
      %s183 = sphi 0, %s182
      %s199 = sphi 0, %s183
      %s205 = sphi 0, %s207
      %s208 = sphi 0, %s205
      %s209 = sphi 0, %s208
      %s225 = sphi 0, %s209
    $region4: #{tpu_custom_call.1} parent=1 // loop_header_branch
      %20 = sbr.rel (%p18) target = $region8
    $region5: #{tpu_custom_call.1} parent=1 // loop_body
      %s22 = ssub.s32 %s17, 1
      %s23 = ssub.s32 %s17, 2
      %s24 = sadd.s32 %s17, 1
      %s25 = ssub.s32 %s17, %s24
      %p26 = scmp.eq.s32.totalorder %s25, 0
      %s28 = sadd.s32 %s27, 1
      %s29 = scalar_select %p26, %s27, %s28
      %p32 = pneg %p26
      %p33 = scmp.eq.s32.totalorder %s17, 1
      %p34 = por %p32, %p33
      %p35 = scmp.ne.s32.totalorder %s27, %s30
      %p36 = scmp.eq.s32.totalorder %s17, 0
      %p37 = por %p35, %p36
      %p38 = scmp.ne.s32.totalorder %s27, %s30
      %p39 = scmp.eq.s32.totalorder %s22, 1
      %p40 = por %p38, %p39
      %p41 = scmp.ne.s32.totalorder %s30, %s31
      %p42 = scmp.eq.s32.totalorder %s22, 0
      %p43 = por %p41, %p42
      %p44 = scmp.ne.s32.totalorder %s30, %s31
      %p45 = scmp.eq.s32.totalorder %s23, 1
      %p46 = por %p44, %p45
      %p48 = scmp.ne.s32.totalorder %s31, %s47
      %p49 = scmp.eq.s32.totalorder %s23, 0
      %p50 = por %p48, %p49
      %s52 = sadd.s32 %s51, 1
      %p55 = scmp.eq.s32.totalorder %s17, 1
      %p56 = scmp.ne.s32.totalorder %s51, %s53
      %p57 = scmp.eq.s32.totalorder %s17, 0
      %p58 = por %p56, %p57
      %p59 = scmp.ne.s32.totalorder %s51, %s53
      %p60 = scmp.eq.s32.totalorder %s22, 1
      %p61 = por %p59, %p60
      %p62 = scmp.ne.s32.totalorder %s53, %s54
      %p63 = scmp.eq.s32.totalorder %s22, 0
      %p64 = por %p62, %p63
      %p65 = scmp.ne.s32.totalorder %s53, %s54
      %p66 = scmp.eq.s32.totalorder %s23, 1
      %p67 = por %p65, %p66
      %p69 = scmp.ne.s32.totalorder %s54, %s68
      %p70 = scmp.eq.s32.totalorder %s23, 0
      %p71 = por %p69, %p70
      %s73 = sadd.s32 %s72, 1
      %p76 = scmp.eq.s32.totalorder %s17, 1
      %p77 = scmp.ne.s32.totalorder %s72, %s74
      %p78 = scmp.eq.s32.totalorder %s17, 0
      %p79 = por %p77, %p78
      %p80 = scmp.ne.s32.totalorder %s72, %s74
      %p81 = scmp.eq.s32.totalorder %s22, 1
      %p82 = por %p80, %p81
      %p83 = scmp.ne.s32.totalorder %s74, %s75
      %p84 = scmp.eq.s32.totalorder %s22, 0
      %p85 = por %p83, %p84
      %p86 = scmp.ne.s32.totalorder %s74, %s75
      %p87 = scmp.eq.s32.totalorder %s23, 1
      %p88 = por %p86, %p87
      %p90 = scmp.ne.s32.totalorder %s75, %s89
      %p91 = scmp.eq.s32.totalorder %s23, 0
      %p92 = por %p90, %p91
      %s94 = sadd.s32 %s93, 1
      %p97 = scmp.eq.s32.totalorder %s17, 1
      %p98 = scmp.ne.s32.totalorder %s93, %s95
      %p99 = scmp.eq.s32.totalorder %s17, 0
      %p100 = por %p98, %p99
      %p101 = scmp.ne.s32.totalorder %s93, %s95
      %p102 = scmp.eq.s32.totalorder %s22, 1
      %p103 = por %p101, %p102
      %p104 = scmp.ne.s32.totalorder %s95, %s96
      %p105 = scmp.eq.s32.totalorder %s22, 0
      %p106 = por %p104, %p105
      %p107 = scmp.ne.s32.totalorder %s95, %s96
      %p108 = scmp.eq.s32.totalorder %s23, 1
      %p109 = por %p107, %p108
      %p111 = scmp.ne.s32.totalorder %s96, %s110
      %p112 = scmp.eq.s32.totalorder %s23, 0
      %p113 = por %p111, %p112
      %s115 = sadd.s32 %s114, 1
      %p118 = scmp.eq.s32.totalorder %s17, 1
      %p119 = scmp.ne.s32.totalorder %s114, %s116
      %p120 = scmp.eq.s32.totalorder %s17, 0
      %p121 = por %p119, %p120
      %p122 = scmp.ne.s32.totalorder %s114, %s116
      %p123 = scmp.eq.s32.totalorder %s22, 1
      %p124 = por %p122, %p123
      %p125 = scmp.ne.s32.totalorder %s116, %s117
      %p126 = scmp.eq.s32.totalorder %s22, 0
      %p127 = por %p125, %p126
      %p128 = scmp.ne.s32.totalorder %s116, %s117
      %p129 = scmp.eq.s32.totalorder %s23, 1
      %p130 = por %p128, %p129
      %p132 = scmp.ne.s32.totalorder %s117, %s131
      %p133 = scmp.eq.s32.totalorder %s23, 0
      %p134 = por %p132, %p133
      %s136 = sadd.s32 %s135, 1
      %p139 = scmp.eq.s32.totalorder %s17, 1
      %p140 = scmp.ne.s32.totalorder %s135, %s137
      %p141 = scmp.eq.s32.totalorder %s17, 0
      %p142 = por %p140, %p141
      %p143 = scmp.ne.s32.totalorder %s135, %s137
      %p144 = scmp.eq.s32.totalorder %s22, 1
      %p145 = por %p143, %p144
      %p146 = scmp.ne.s32.totalorder %s137, %s138
      %p147 = scmp.eq.s32.totalorder %s22, 0
      %p148 = por %p146, %p147
      %p149 = scmp.ne.s32.totalorder %s137, %s138
      %p150 = scmp.eq.s32.totalorder %s23, 1
      %p151 = por %p149, %p150
      %p153 = scmp.ne.s32.totalorder %s138, %s152
      %p154 = scmp.eq.s32.totalorder %s23, 0
      %p155 = por %p153, %p154
      %s157 = sadd.s32 %s156, 1
      %p160 = scmp.eq.s32.totalorder %s17, 1
      %p161 = scmp.ne.s32.totalorder %s156, %s158
      %p162 = scmp.eq.s32.totalorder %s17, 0
      %p163 = por %p161, %p162
      %p164 = scmp.ne.s32.totalorder %s156, %s158
      %p165 = scmp.eq.s32.totalorder %s22, 1
      %p166 = por %p164, %p165
      %p167 = scmp.ne.s32.totalorder %s158, %s159
      %p168 = scmp.eq.s32.totalorder %s22, 0
      %p169 = por %p167, %p168
      %p170 = scmp.ne.s32.totalorder %s158, %s159
      %p171 = scmp.eq.s32.totalorder %s23, 1
      %p172 = por %p170, %p171
      %p174 = scmp.ne.s32.totalorder %s159, %s173
      %p175 = scmp.eq.s32.totalorder %s23, 0
      %p176 = por %p174, %p175
      %s177 = ssub.s32 %s17, %s24
      %p178 = scmp.eq.s32.totalorder %s177, 0
      %s180 = sadd.s32 %s179, 1
      %s181 = scalar_select %p178, %s179, %s180
      %p184 = pneg %p178
      %p185 = scmp.eq.s32.totalorder %s17, 1
      %p186 = por %p184, %p185
      %p187 = scmp.ne.s32.totalorder %s179, %s182
      %p188 = scmp.eq.s32.totalorder %s17, 0
      %p189 = por %p187, %p188
      %p190 = scmp.ne.s32.totalorder %s179, %s182
      %p191 = scmp.eq.s32.totalorder %s22, 1
      %p192 = por %p190, %p191
      %p193 = scmp.ne.s32.totalorder %s182, %s183
      %p194 = scmp.eq.s32.totalorder %s22, 0
      %p195 = por %p193, %p194
      %p196 = scmp.ne.s32.totalorder %s182, %s183
      %p197 = scmp.eq.s32.totalorder %s23, 1
      %p198 = por %p196, %p197
      %p200 = scmp.ne.s32.totalorder %s183, %s199
      %p201 = scmp.eq.s32.totalorder %s23, 0
      %p202 = por %p200, %p201
      %s203 = ssub.s32 %s17, %s24
      %p204 = scmp.eq.s32.totalorder %s203, 0
      %s206 = sadd.s32 %s205, 1
      %s207 = scalar_select %p204, %s205, %s206
      %p210 = pneg %p204
      %p211 = scmp.eq.s32.totalorder %s17, 1
      %p212 = por %p210, %p211
      %p213 = scmp.ne.s32.totalorder %s205, %s208
      %p214 = scmp.eq.s32.totalorder %s17, 0
      %p215 = por %p213, %p214
      %p216 = scmp.ne.s32.totalorder %s205, %s208
      %p217 = scmp.eq.s32.totalorder %s22, 1
      %p218 = por %p216, %p217
      %p219 = scmp.ne.s32.totalorder %s208, %s209
      %p220 = scmp.eq.s32.totalorder %s22, 0
      %p221 = por %p219, %p220
      %p222 = scmp.ne.s32.totalorder %s208, %s209
      %p223 = scmp.eq.s32.totalorder %s23, 1
      %p224 = por %p222, %p223
      %p226 = scmp.ne.s32.totalorder %s209, %s225
      %p227 = scmp.eq.s32.totalorder %s23, 0
      %p228 = por %p226, %p227
      %p229 = scmp.le.s32.totalorder 1, %s17
      %p230 = scmp.lt.s32.totalorder %s17, 3
      %p231 = pnand %p229, %p230
      %p232 = pneg %p231
      // Predicated region
      $region9: #{tpu_custom_call.1} parent=5 // pred_check
        _
      $region10: #{tpu_custom_call.1} parent=5 // pred_check_branch
        %234 = sbr.rel (%p231) target = $region12
      $region11: #{tpu_custom_call.1} parent=5 // pred_region
        %s235 = ssub.s32 %s17, 1
        // Predicated region
        $region13: #{tpu_custom_call.1} parent=11 // pred_check
          %p236 = pneg %p64
        $region14: #{tpu_custom_call.1} parent=11 // pred_check_branch
          %238 = sbr.rel (%p236) target = $region16
        $region15: #{tpu_custom_call.1} parent=11 // pred_region
          _
        $region16: #{tpu_custom_call.1} parent=11 // pred_fallthru
          _
        // Predicated region
        $region17: #{tpu_custom_call.1} parent=11 // pred_check
          %p239 = pneg %p85
        $region18: #{tpu_custom_call.1} parent=11 // pred_check_branch
          %241 = sbr.rel (%p239) target = $region20
        $region19: #{tpu_custom_call.1} parent=11 // pred_region
          _
        $region20: #{tpu_custom_call.1} parent=11 // pred_fallthru
          _
        // Predicated region
        $region21: #{tpu_custom_call.1} parent=11 // pred_check
          %p242 = pneg %p106
        $region22: #{tpu_custom_call.1} parent=11 // pred_check_branch
          %244 = sbr.rel (%p242) target = $region24
        $region23: #{tpu_custom_call.1} parent=11 // pred_region
          _
        $region24: #{tpu_custom_call.1} parent=11 // pred_fallthru
          _
        // Predicated region
        $region25: #{tpu_custom_call.1} parent=11 // pred_check
          %p245 = pneg %p127
        $region26: #{tpu_custom_call.1} parent=11 // pred_check_branch
          %247 = sbr.rel (%p245) target = $region28
        $region27: #{tpu_custom_call.1} parent=11 // pred_region
          _
        $region28: #{tpu_custom_call.1} parent=11 // pred_fallthru
          _
        // Predicated region
        $region29: #{tpu_custom_call.1} parent=11 // pred_check
          %p248 = pneg %p148
        $region30: #{tpu_custom_call.1} parent=11 // pred_check_branch
          %250 = sbr.rel (%p248) target = $region32
        $region31: #{tpu_custom_call.1} parent=11 // pred_region
          _
        $region32: #{tpu_custom_call.1} parent=11 // pred_fallthru
          _
        // Predicated region
        $region33: #{tpu_custom_call.1} parent=11 // pred_check
          %p251 = pneg %p169
        $region34: #{tpu_custom_call.1} parent=11 // pred_check_branch
          %253 = sbr.rel (%p251) target = $region36
        $region35: #{tpu_custom_call.1} parent=11 // pred_region
          _
        $region36: #{tpu_custom_call.1} parent=11 // pred_fallthru
          _
      $region12: #{tpu_custom_call.1} parent=5 // pred_fallthru
        _
      %p254 = scmp.lt.s32.totalorder %s17, 2
      // Predicated region
      $region37: #{tpu_custom_call.1} parent=5 // pred_check
        %p255 = pneg %p254
      $region38: #{tpu_custom_call.1} parent=5 // pred_check_branch
        %257 = sbr.rel (%p255) target = $region40
      $region39: #{tpu_custom_call.1} parent=5 // pred_region
        // Predicated region
        $region41: #{tpu_custom_call.1} parent=39 // pred_check
          %p258 = pneg %p37
        $region42: #{tpu_custom_call.1} parent=39 // pred_check_branch
          %260 = sbr.rel (%p258) target = $region44
        $region43: #{tpu_custom_call.1} parent=39 // pred_region
          %s261 = sand.u32 %s27, 1
          %s262 = sand.u32 %s27, 1
          %s263 = smul.addr %s262, 16
          %s264 = scalar_lea.vmem [#allocation2], %s263
          %s265 = smul.addr %s17, 8
          %s266 = scalar_lea.vmem %s0, %s265
          // Predicated region
          $region45: #{tpu_custom_call.1} parent=43 // pred_check
            _
          $region46: #{tpu_custom_call.1} parent=43 // pred_check_branch
            %268 = sbr.rel (0) target = $region48
          $region47: #{tpu_custom_call.1} parent=43 // pred_region
            // Predicated region
            $region49: #{tpu_custom_call.1} parent=47 // pred_check
              _
            $region50: #{tpu_custom_call.1} parent=47 // pred_check_branch
              %270 = sbr.rel (0) target = $region52
            $region51: #{tpu_custom_call.1} parent=47 // pred_region
              // Predicated region
              $region64: #{tpu_custom_call.1} parent=51 // pred_check
                _
              $region65: #{tpu_custom_call.1} parent=51 // pred_check_branch
                %287 = sbr.rel (0) target = $region67
              $region66: #{tpu_custom_call.1} parent=51 // pred_region
                loop: start=0, step=1, limit=1
                $region68: #{tpu_custom_call.1} parent=66 // loop_pre_header
                  _
                $region69: #{tpu_custom_call.1} parent=66 // loop_header
                  %s289 = sphi 0, %s293
                  %p290 = scmp.ge.s32.totalorder %s289, 1
                  %s294 = sphi %s266, %s266
                  %s295 = sphi %s264, %s264
                $region70: #{tpu_custom_call.1} parent=66 // loop_header_branch
                  %292 = sbr.rel (%p290) target = $region74
                $region71: #{tpu_custom_call.1} parent=66 // loop_body
                  %v296 = vld [vmem:[%s294] sm:$0xff]
                  %297 = vst [vmem:[%s295] sm:$0xff] %v296
                  %v298 = vld [vmem:[%s294 + $0x10] sm:$0xff]
                  %299 = vst [vmem:[%s295 + $0x8] sm:$0xff] %v298
                $region72: #{tpu_custom_call.1} parent=66 // loop_footer
                  %s293 = sadd.s32 1, %s289
                $region73: #{tpu_custom_call.1} parent=66 // loop_footer_branch
                  %288 = sbr.rel target = $region69
                $region74: #{tpu_custom_call.1} parent=66 // loop_exit
                  _
              $region67: #{tpu_custom_call.1} parent=51 // pred_fallthru
                _
              // Predicated region
              $region75: #{tpu_custom_call.1} parent=51 // pred_check
                _
              $region76: #{tpu_custom_call.1} parent=51 // pred_check_branch
                %301 = sbr.rel target = $region78
              $region77: #{tpu_custom_call.1} parent=51 // pred_region
                _
              $region78: #{tpu_custom_call.1} parent=51 // pred_fallthru
                _
            $region52: #{tpu_custom_call.1} parent=47 // pred_fallthru
              _
            // Predicated region
            $region53: #{tpu_custom_call.1} parent=47 // pred_check
              _
            $region54: #{tpu_custom_call.1} parent=47 // pred_check_branch
              %272 = sbr.rel target = $region56
            $region55: #{tpu_custom_call.1} parent=47 // pred_region
              loop: start=0, step=1, limit=1
              $region57: #{tpu_custom_call.1} parent=55 // loop_pre_header
                _
              $region58: #{tpu_custom_call.1} parent=55 // loop_header
                %s275 = sphi 0, %s279
                %p276 = scmp.ge.s32.totalorder %s275, 1
                %s280 = sphi %s266, %s266
                %s281 = sphi %s264, %s264
              $region59: #{tpu_custom_call.1} parent=55 // loop_header_branch
                %278 = sbr.rel (%p276) target = $region63
              $region60: #{tpu_custom_call.1} parent=55 // loop_body
                %v282 = vld [vmem:[%s280] sm:$0xff]
                %283 = vst [vmem:[%s281] sm:$0xff] %v282
                %v284 = vld [vmem:[%s280 + $0x10] sm:$0xff]
                %285 = vst [vmem:[%s281 + $0x8] sm:$0xff] %v284
              $region61: #{tpu_custom_call.1} parent=55 // loop_footer
                %s279 = sadd.s32 1, %s275
              $region62: #{tpu_custom_call.1} parent=55 // loop_footer_branch
                %274 = sbr.rel target = $region58
              $region63: #{tpu_custom_call.1} parent=55 // loop_exit
                _
            $region56: #{tpu_custom_call.1} parent=47 // pred_fallthru
              _
          $region48: #{tpu_custom_call.1} parent=43 // pred_fallthru
            _
          %302 = vnop
        $region44: #{tpu_custom_call.1} parent=39 // pred_fallthru
          _
        // Predicated region
        $region79: #{tpu_custom_call.1} parent=39 // pred_check
          %p303 = pneg %p189
        $region80: #{tpu_custom_call.1} parent=39 // pred_check_branch
          %305 = sbr.rel (%p303) target = $region82
        $region81: #{tpu_custom_call.1} parent=39 // pred_region
          %p306 = scmp.lt.s32.totalorder %s17, 1
          %s307 = scalar_select %p306, %s17, 1
          %s308 = smul.addr %s307, 4
          %s309 = scalar_lea.vmem %s7, %s308
        $region82: #{tpu_custom_call.1} parent=39 // pred_fallthru
          _
      $region40: #{tpu_custom_call.1} parent=5 // pred_fallthru
        _
      %p310 = scmp.le.s32.totalorder 1, %s17
      %p311 = scmp.lt.s32.totalorder %s17, 3
      %p312 = pnand %p310, %p311
      %p313 = pneg %p312
      // Predicated region
      $region83: #{tpu_custom_call.1} parent=5 // pred_check
        _
      $region84: #{tpu_custom_call.1} parent=5 // pred_check_branch
        %315 = sbr.rel (%p312) target = $region86
      $region85: #{tpu_custom_call.1} parent=5 // pred_region
        %s316 = ssub.s32 %s17, 1
        %s317 = sand.u32 %s30, 1
        %s318 = sand.u32 %s30, 1
        %s319 = smul.addr %s318, 16
        %s320 = scalar_lea.vmem [#allocation2], %s319
        // Predicated region
        $region87: #{tpu_custom_call.1} parent=85 // pred_check
          %p321 = pneg %p43
        $region88: #{tpu_custom_call.1} parent=85 // pred_check_branch
          %323 = sbr.rel (%p321) target = $region90
        $region89: #{tpu_custom_call.1} parent=85 // pred_region
          _
        $region90: #{tpu_custom_call.1} parent=85 // pred_fallthru
          _
        %s324 = sand.u32 %s30, 1
        %s325 = sand.u32 %s30, 1
        %s326 = smul.addr %s325, 16
        %s327 = scalar_lea.vmem [#allocation2], %s326
        %p328 = pneg %p43
        %p329 = pneg %p40
        %p330 = pneg %p64
        %p331 = pneg %p61
        %p332 = pneg %p85
        %p333 = pneg %p82
        %p334 = pneg %p106
        %p335 = pneg %p103
        %p336 = pneg %p127
        %p337 = pneg %p124
        %p338 = pneg %p148
        %p339 = pneg %p145
        %p340 = pneg %p169
        %p341 = pneg %p166
        %p342 = scmp.lt.s32.totalorder %s22, 1
        %s343 = scalar_select %p342, %s22, 1
        %s344 = smul.addr %s343, 4
        %s345 = scalar_lea.vmem %s7, %s344
        %p346 = pneg %p195
        %p347 = pneg %p192
        %p348 = pneg %p221
        %p349 = pneg %p218
        %s350 = sand.u32 %s208, 1
        %s351 = scalar_lea.sflag [#allocation4], %s350
        %s352 = sand.u32 %s208, 1
        %s353 = smul.addr %s352, 4
        %s354 = scalar_lea.vmem [#allocation3], %s353
        %p355 = scmp.lt.s32.totalorder %s22, 1
        %s356 = scalar_select %p355, %s22, 1
        %s357 = smul.addr %s356, 4
        %s358 = scalar_lea.vmem %s7, %s357
        %v359 = vld [vmem:[%s320] sm:$0xff]
        %v360 = vld [vmem:[%s320 + $0x8] sm:$0xff]
        %v361 = vld [vmem:[%s1] sm:$0xff]
        %v362 = vld [vmem:[%s1 + $0x8] sm:$0xff]
        %v363 = vld [vmem:[%s1 + $0x10] sm:$0xff]
        %v364 = vld [vmem:[%s1 + $0x18] sm:$0xff]
        %v365 = vld [vmem:[%s2] sm:$0xff]
        %v366 = vld [vmem:[%s2 + $0x8] sm:$0xff]
        %v367 = vld [vmem:[%s2 + $0x10] sm:$0xff]
        %v368 = vld [vmem:[%s2 + $0x18] sm:$0xff]
        %370 = vset.pattern.permute.xlu0 0
        %371 = vperm.xlu0 %370, %v365
        %v372 = vpop.permute.xlu0 %371
        %375 = vset.pattern.permute.xlu0 0
        %376 = vperm.xlu0 %375, %v366
        %v377 = vpop.permute.xlu0 %376
        %380 = vset.pattern.permute.xlu0 0
        %381 = vperm.xlu0 %380, %v367
        %v382 = vpop.permute.xlu0 %381
        %385 = vset.pattern.permute.xlu0 0
        %386 = vperm.xlu0 %385, %v368
        %v387 = vpop.permute.xlu0 %386
        %vm389 = vcmask 130048
        %v391 = vsel %vm389, %v361, 0
        %v394 = vsel %vm389, %v362, 0
        %v397 = vsel %vm389, %v363, 0
        %v400 = vsel %vm389, %v364, 0
        %402 = vmatprep.subr.mxu0 0.0
        %403 = vmatpush1.msra.mxu0 %v359
        %404 = vmatprep.subr.mxu0 0.0
        %405 = vmatpush1.msra.mxu0 %v360
        %406 = vmatprep.subr.mxu0 0.0
        %407 = vmatpush1.msra.mxu0 0.0
        %408 = vmatprep.subr.mxu0 0.0
        %409 = vmatpush1.msra.mxu0 0.0
        %410 = vmatprep.subr.mxu0 0.0
        %411 = vmatpush1.msra.mxu0 0.0
        %412 = vmatprep.subr.mxu0 0.0
        %413 = vmatpush1.msra.mxu0 0.0
        %414 = vmatprep.subr.mxu0 0.0
        %415 = vmatpush1.msra.mxu0 0.0
        %416 = vmatprep.subr.mxu0 0.0
        %417 = vmatpush1.msra.mxu0 0.0
        %418 = vmatprep.subr.mxu0 0.0
        %419 = vmatpush1.msra.mxu0 0.0
        %420 = vmatprep.subr.mxu0 0.0
        %421 = vmatpush1.msra.mxu0 0.0
        %422 = vmatprep.subr.mxu0 0.0
        %423 = vmatpush1.msra.mxu0 0.0
        %424 = vmatprep.subr.mxu0 0.0
        %425 = vmatpush1.msra.mxu0 0.0
        %426 = vmatprep.subr.mxu0 0.0
        %427 = vmatpush1.msra.mxu0 0.0
        %428 = vmatprep.subr.mxu0 0.0
        %429 = vmatpush1.msra.mxu0 0.0
        %430 = vmatprep.subr.mxu0 0.0
        %431 = vmatpush1.msra.mxu0 0.0
        %432 = vmatprep.subr.mxu0 0.0
        %433 = vmatpush1.msra.mxu0 0.0
        %434 = vmatprep.subr.mxu0 0.0
        %435 = vmatpush1.msra.mxu0 0.0
        %436 = vmatprep.subr.mxu0 0.0
        %437 = vmatpush1.msra.mxu0 0.0
        %438 = vmatprep.subr.mxu0 0.0
        %439 = vmatpush1.msra.mxu0 0.0
        %440 = vmatprep.subr.mxu0 0.0
        %441 = vmatpush1.msra.mxu0 0.0
        %442 = vmatprep.subr.mxu0 0.0
        %443 = vmatpush1.msra.mxu0 0.0
        %444 = vmatprep.subr.mxu0 0.0
        %445 = vmatpush1.msra.mxu0 0.0
        %446 = vmatprep.subr.mxu0 0.0
        %447 = vmatpush1.msra.mxu0 0.0
        %448 = vmatprep.subr.mxu0 0.0
        %449 = vmatpush1.msra.mxu0 0.0
        %450 = vmatprep.subr.mxu0 0.0
        %451 = vmatpush1.msra.mxu0 0.0
        %452 = vmatprep.subr.mxu0 0.0
        %453 = vmatpush1.msra.mxu0 0.0
        %454 = vmatprep.subr.mxu0 0.0
        %455 = vmatpush1.msra.mxu0 0.0
        %456 = vmatprep.subr.mxu0 0.0
        %457 = vmatpush1.msra.mxu0 0.0
        %458 = vmatprep.subr.mxu0 0.0
        %459 = vmatpush1.msra.mxu0 0.0
        %460 = vmatprep.subr.mxu0 0.0
        %461 = vmatpush1.msra.mxu0 0.0
        %462 = vmatprep.subr.mxu0 0.0
        %463 = vmatpush1.msra.mxu0 0.0
        %464 = vmatprep.subr.mxu0 0.0
        %465 = vmatpush1.msra.mxu0 0.0
        %466 = vmatprep.mubr.f32.mxu0 0.0
        %467 = vmatmul.mubr.f32.gmra.mrb[0].mxu0 %v391
        %v468 = vpop.f32.mrb[0].mxu0
        %v469 = vadd.f32 %v372, %v468
        %v470 = vpop.f32.mrb[0].mxu0
        %471 = vmatprep.mubr.f32.mxu0 0.0
        %472 = vmatmul.mubr.f32.gmra.mrb[0].mxu0 %v394
        %v473 = vpop.f32.mrb[0].mxu0
        %v474 = vadd.f32 %v377, %v473
        %v475 = vpop.f32.mrb[0].mxu0
        %476 = vmatprep.mubr.f32.mxu0 0.0
        %477 = vmatmul.mubr.f32.gmra.mrb[0].mxu0 %v397
        %v478 = vpop.f32.mrb[0].mxu0
        %v479 = vadd.f32 %v382, %v478
        %v480 = vpop.f32.mrb[0].mxu0
        %481 = vmatprep.mubr.f32.mxu0 0.0
        %482 = vmatmul.mubr.f32.gmra.mrb[0].mxu0 %v400
        %v483 = vpop.f32.mrb[0].mxu0
        %v484 = vadd.f32 %v387, %v483
        %v485 = vpop.f32.mrb[0].mxu0
        %486 = vdwg.mxu0
        %v487 = vmax.f32 %v469, 0.0
        %v488 = vmax.f32 %v474, 0.0
        %v489 = vmax.f32 %v479, 0.0
        %v490 = vmax.f32 %v484, 0.0
        %v491 = vld [vmem:[%s3] sm:$0xff]
        %v492 = vld [vmem:[%s3 + $0x8] sm:$0xff]
        %v493 = vld [vmem:[%s3 + $0x10] sm:$0xff]
        %v494 = vld [vmem:[%s3 + $0x18] sm:$0xff]
        %v495 = vld [vmem:[%s4] sm:$0xff]
        %v496 = vld [vmem:[%s4 + $0x8] sm:$0xff]
        %v497 = vld [vmem:[%s4 + $0x10] sm:$0xff]
        %v498 = vld [vmem:[%s4 + $0x18] sm:$0xff]
        %500 = vset.pattern.permute.xlu0 0
        %501 = vperm.xlu0 %500, %v495
        %v502 = vpop.permute.xlu0 %501
        %505 = vset.pattern.permute.xlu0 0
        %506 = vperm.xlu0 %505, %v496
        %v507 = vpop.permute.xlu0 %506
        %510 = vset.pattern.permute.xlu0 0
        %511 = vperm.xlu0 %510, %v497
        %v512 = vpop.permute.xlu0 %511
        %515 = vset.pattern.permute.xlu0 0
        %516 = vperm.xlu0 %515, %v498
        %v517 = vpop.permute.xlu0 %516
        %vm519 = vcmask 261120
        %v521 = vsel %vm519, %v491, 0
        %v524 = vsel %vm519, %v492, 0
        %v527 = vsel %vm519, %v493, 0
        %v530 = vsel %vm519, %v494, 0
        %532 = vmatprep.subr.mxu0 0.0
        %533 = vmatpush1.msra.mxu0 %v487
        %534 = vmatprep.subr.mxu0 0.0
        %535 = vmatpush1.msra.mxu0 %v488
        %536 = vmatprep.subr.mxu0 0.0
        %537 = vmatpush1.msra.mxu0 %v489
        %538 = vmatprep.subr.mxu0 0.0
        %539 = vmatpush1.msra.mxu0 %v490
        %540 = vmatprep.subr.mxu0 0.0
        %541 = vmatpush1.msra.mxu0 0.0
        %542 = vmatprep.subr.mxu0 0.0
        %543 = vmatpush1.msra.mxu0 0.0
        %544 = vmatprep.subr.mxu0 0.0
        %545 = vmatpush1.msra.mxu0 0.0
        %546 = vmatprep.subr.mxu0 0.0
        %547 = vmatpush1.msra.mxu0 0.0
        %548 = vmatprep.subr.mxu0 0.0
        %549 = vmatpush1.msra.mxu0 0.0
        %550 = vmatprep.subr.mxu0 0.0
        %551 = vmatpush1.msra.mxu0 0.0
        %552 = vmatprep.subr.mxu0 0.0
        %553 = vmatpush1.msra.mxu0 0.0
        %554 = vmatprep.subr.mxu0 0.0
        %555 = vmatpush1.msra.mxu0 0.0
        %556 = vmatprep.subr.mxu0 0.0
        %557 = vmatpush1.msra.mxu0 0.0
        %558 = vmatprep.subr.mxu0 0.0
        %559 = vmatpush1.msra.mxu0 0.0
        %560 = vmatprep.subr.mxu0 0.0
        %561 = vmatpush1.msra.mxu0 0.0
        %562 = vmatprep.subr.mxu0 0.0
        %563 = vmatpush1.msra.mxu0 0.0
        %564 = vmatprep.subr.mxu0 0.0
        %565 = vmatpush1.msra.mxu0 0.0
        %566 = vmatprep.subr.mxu0 0.0
        %567 = vmatpush1.msra.mxu0 0.0
        %568 = vmatprep.subr.mxu0 0.0
        %569 = vmatpush1.msra.mxu0 0.0
        %570 = vmatprep.subr.mxu0 0.0
        %571 = vmatpush1.msra.mxu0 0.0
        %572 = vmatprep.subr.mxu0 0.0
        %573 = vmatpush1.msra.mxu0 0.0
        %574 = vmatprep.subr.mxu0 0.0
        %575 = vmatpush1.msra.mxu0 0.0
        %576 = vmatprep.subr.mxu0 0.0
        %577 = vmatpush1.msra.mxu0 0.0
        %578 = vmatprep.subr.mxu0 0.0
        %579 = vmatpush1.msra.mxu0 0.0
        %580 = vmatprep.subr.mxu0 0.0
        %581 = vmatpush1.msra.mxu0 0.0
        %582 = vmatprep.subr.mxu0 0.0
        %583 = vmatpush1.msra.mxu0 0.0
        %584 = vmatprep.subr.mxu0 0.0
        %585 = vmatpush1.msra.mxu0 0.0
        %586 = vmatprep.subr.mxu0 0.0
        %587 = vmatpush1.msra.mxu0 0.0
        %588 = vmatprep.subr.mxu0 0.0
        %589 = vmatpush1.msra.mxu0 0.0
        %590 = vmatprep.subr.mxu0 0.0
        %591 = vmatpush1.msra.mxu0 0.0
        %592 = vmatprep.subr.mxu0 0.0
        %593 = vmatpush1.msra.mxu0 0.0
        %594 = vmatprep.subr.mxu0 0.0
        %595 = vmatpush1.msra.mxu0 0.0
        %596 = vmatprep.mubr.f32.mxu0 0.0
        %597 = vmatmul.mubr.f32.gmra.mrb[0].mxu0 %v521
        %v598 = vpop.f32.mrb[0].mxu0
        %v599 = vadd.f32 %v502, %v598
        %v600 = vpop.f32.mrb[0].mxu0
        %601 = vmatprep.mubr.f32.mxu0 0.0
        %602 = vmatmul.mubr.f32.gmra.mrb[0].mxu0 %v524
        %v603 = vpop.f32.mrb[0].mxu0
        %v604 = vadd.f32 %v507, %v603
        %v605 = vpop.f32.mrb[0].mxu0
        %606 = vmatprep.mubr.f32.mxu0 0.0
        %607 = vmatmul.mubr.f32.gmra.mrb[0].mxu0 %v527
        %v608 = vpop.f32.mrb[0].mxu0
        %v609 = vadd.f32 %v512, %v608
        %v610 = vpop.f32.mrb[0].mxu0
        %611 = vmatprep.mubr.f32.mxu0 0.0
        %612 = vmatmul.mubr.f32.gmra.mrb[0].mxu0 %v530
        %v613 = vpop.f32.mrb[0].mxu0
        %v614 = vadd.f32 %v517, %v613
        %v615 = vpop.f32.mrb[0].mxu0
        %616 = vdwg.mxu0
        %v617 = vmax.f32 %v599, 0.0
        %v618 = vmax.f32 %v604, 0.0
        %v619 = vmax.f32 %v609, 0.0
        %v620 = vmax.f32 %v614, 0.0
        %v621 = vld [vmem:[%s5] sm:$0xff]
        %v622 = vld [vmem:[%s6] sm:$0xff]
        %624 = vset.pattern.permute.xlu0 0
        %625 = vperm.xlu0 %624, %v622
        %v626 = vpop.permute.xlu0 %625
        %v629 = vsel %vm519, %v621, 0
        %631 = vmatprep.subr.mxu0 0.0
        %632 = vmatpush1.msra.mxu0 %v617
        %633 = vmatprep.subr.mxu0 0.0
        %634 = vmatpush1.msra.mxu0 %v618
        %635 = vmatprep.subr.mxu0 0.0
        %636 = vmatpush1.msra.mxu0 %v619
        %637 = vmatprep.subr.mxu0 0.0
        %638 = vmatpush1.msra.mxu0 %v620
        %639 = vmatprep.subr.mxu0 0.0
        %640 = vmatpush1.msra.mxu0 0.0
        %641 = vmatprep.subr.mxu0 0.0
        %642 = vmatpush1.msra.mxu0 0.0
        %643 = vmatprep.subr.mxu0 0.0
        %644 = vmatpush1.msra.mxu0 0.0
        %645 = vmatprep.subr.mxu0 0.0
        %646 = vmatpush1.msra.mxu0 0.0
        %647 = vmatprep.subr.mxu0 0.0
        %648 = vmatpush1.msra.mxu0 0.0
        %649 = vmatprep.subr.mxu0 0.0
        %650 = vmatpush1.msra.mxu0 0.0
        %651 = vmatprep.subr.mxu0 0.0
        %652 = vmatpush1.msra.mxu0 0.0
        %653 = vmatprep.subr.mxu0 0.0
        %654 = vmatpush1.msra.mxu0 0.0
        %655 = vmatprep.subr.mxu0 0.0
        %656 = vmatpush1.msra.mxu0 0.0
        %657 = vmatprep.subr.mxu0 0.0
        %658 = vmatpush1.msra.mxu0 0.0
        %659 = vmatprep.subr.mxu0 0.0
        %660 = vmatpush1.msra.mxu0 0.0
        %661 = vmatprep.subr.mxu0 0.0
        %662 = vmatpush1.msra.mxu0 0.0
        %663 = vmatprep.subr.mxu0 0.0
        %664 = vmatpush1.msra.mxu0 0.0
        %665 = vmatprep.subr.mxu0 0.0
        %666 = vmatpush1.msra.mxu0 0.0
        %667 = vmatprep.subr.mxu0 0.0
        %668 = vmatpush1.msra.mxu0 0.0
        %669 = vmatprep.subr.mxu0 0.0
        %670 = vmatpush1.msra.mxu0 0.0
        %671 = vmatprep.subr.mxu0 0.0
        %672 = vmatpush1.msra.mxu0 0.0
        %673 = vmatprep.subr.mxu0 0.0
        %674 = vmatpush1.msra.mxu0 0.0
        %675 = vmatprep.subr.mxu0 0.0
        %676 = vmatpush1.msra.mxu0 0.0
        %677 = vmatprep.subr.mxu0 0.0
        %678 = vmatpush1.msra.mxu0 0.0
        %679 = vmatprep.subr.mxu0 0.0
        %680 = vmatpush1.msra.mxu0 0.0
        %681 = vmatprep.subr.mxu0 0.0
        %682 = vmatpush1.msra.mxu0 0.0
        %683 = vmatprep.subr.mxu0 0.0
        %684 = vmatpush1.msra.mxu0 0.0
        %685 = vmatprep.subr.mxu0 0.0
        %686 = vmatpush1.msra.mxu0 0.0
        %687 = vmatprep.subr.mxu0 0.0
        %688 = vmatpush1.msra.mxu0 0.0
        %689 = vmatprep.subr.mxu0 0.0
        %690 = vmatpush1.msra.mxu0 0.0
        %691 = vmatprep.subr.mxu0 0.0
        %692 = vmatpush1.msra.mxu0 0.0
        %693 = vmatprep.subr.mxu0 0.0
        %694 = vmatpush1.msra.mxu0 0.0
        %695 = vmatprep.mubr.f32.mxu0 0.0
        %696 = vmatmul.mubr.f32.gmra.mrb[0].mxu0 %v629
        %v697 = vpop.f32.mrb[0].mxu0
        %v698 = vadd.f32 %v626, %v697
        %v699 = vpop.f32.mrb[0].mxu0
        %700 = vdwg.mxu0
        %v701 = vmin.f32 %v698, 20.0
        %vm702 = vcmp.gt.f32.partialorder %v698, 20.0
        %v703 = vmul.f32 %v701, 1.442695
        %v704 = vpow.pop %v703
        %v705 = vadd.f32 %v704, 1.0
        %v706 = vlog2.pop %v705
        %v707 = vmul.f32 %v706, 0.6931472
        %v708 = vmul.f32 -0.5, %v704
        %v709 = vadd.f32 %v708, 1.0
        %v710 = vmul.f32 %v709, %v704
        %v711 = vand.u32 2147483647, %v704
        %vm712 = vcmp.lt.f32.partialorder %v711, 0.0004427343
        %v713 = vsel %vm712, %v710, %v707
        %v714 = vsel %vm702, %v698, %v713
        %v715 = vld [vmem:[%s358] sm:$0xf]
        %v717 = vrot.slane %v715, 4
        %v719 = vmul.f32 %v714, %v717
        %v721 = vrot.slane %v719, 4
        %v723 = vadd.f32 %v698, %v721
        %724 = vst [vmem:[%s354] sm:$0xf] %v723
        %s725 = sand.u32 %s208, 1
        %s726 = scalar_lea.sflag [#allocation4], %s725
        %s727 = sand.u32 %s208, 1
        %s728 = smul.addr %s727, 4
        %s729 = scalar_lea.vmem [#allocation3], %s728
        // Predicated region
        $region91: #{tpu_custom_call.1} parent=85 // pred_check
          %p730 = pneg %p218
        $region92: #{tpu_custom_call.1} parent=85 // pred_check_branch
          %732 = sbr.rel (%p730) target = $region94
        $region93: #{tpu_custom_call.1} parent=85 // pred_region
          %s734 = ssub.s32 64, 64
          %735 = vsyncadd %s726, %s734
          %s736 = smul.addr %s22, 64
          %s737 = scalar_lea.hbm %s8, %s736
          %s739 = sshll.u32 %s729, 4
          %s740 = int_to_ptr.vmem [resolvable:$true] %s739
          %742 = dma.vmem_to_hbm [thread:$0]  %s740, 64, %s737, %s726
        $region94: #{tpu_custom_call.1} parent=85 // pred_fallthru
          _
      $region86: #{tpu_custom_call.1} parent=5 // pred_fallthru
        _
      %p743 = scmp.le.s32.totalorder 2, %s17
      // Predicated region
      $region95: #{tpu_custom_call.1} parent=5 // pred_check
        %p744 = pneg %p743
      $region96: #{tpu_custom_call.1} parent=5 // pred_check_branch
        %746 = sbr.rel (%p744) target = $region98
      $region97: #{tpu_custom_call.1} parent=5 // pred_region
        %s747 = ssub.s32 %s17, 2
        // Predicated region
        $region99: #{tpu_custom_call.1} parent=97 // pred_check
          %p748 = pneg %p224
        $region100: #{tpu_custom_call.1} parent=97 // pred_check_branch
          %750 = sbr.rel (%p748) target = $region102
        $region101: #{tpu_custom_call.1} parent=97 // pred_region
          %s751 = sand.u32 %s209, 1
          %s752 = scalar_lea.sflag [#allocation4], %s751
          %s753 = sand.u32 %s209, 1
          %s754 = smul.addr %s753, 4
          %s755 = scalar_lea.vmem [#allocation3], %s754
          %756 = dma.done %s752, 64
        $region102: #{tpu_custom_call.1} parent=97 // pred_fallthru
          _
      $region98: #{tpu_custom_call.1} parent=5 // pred_fallthru
        _
    $region6: #{tpu_custom_call.1} parent=1 // loop_footer
      %s21 = sadd.s32 1, %s17
    $region7: #{tpu_custom_call.1} parent=1 // loop_footer_branch
      %16 = sbr.rel target = $region3
    $region8: #{tpu_custom_call.1} parent=1 // loop_exit
      _
    %757 = vsyncpa [#allocation4], 1
    %s758 = scalar_lea.sflag [#allocation4], 1
    %759 = vsyncpa %s758, 1

</llo_original>
